<compile_context>
chip_gen: v7x
topology: tpu7x:2x2x1
jax: 0.10.0
libtpu: 0.0.40
codegen_flags: <defaults>
</compile_context>

<pallas_src>
import jax
import jax.numpy as jnp
import numpy as np
from jax import lax
from jax.experimental import pallas as pl
from jax.experimental.pallas import tpu as pltpu

EPS = 1e-5
NEG_SLOPE = 0.2


def _pick_spatial_tile(hw, bytes_per_col_in, bytes_per_col_out,
                       budget_bytes=20 * 1024 * 1024):
    """Largest multiple-of-128 tile dividing hw whose double-buffered in/out blocks
    fit the VMEM budget; falls back to the full spatial extent."""
    for cand in (4096, 2048, 1024, 512, 256, 128):
        if hw % cand == 0 and 2 * cand * (bytes_per_col_in + bytes_per_col_out) <= budget_bytes:
            return cand
    return hw


def _make_kernel(cout, n_el):
    inv_nel = 1.0 / float(n_el)   # n_el = 4*H*W output positions per (n, co)

    def kernel(x_ref, w_ref, o_ref, s_ref, ss_ref, scale_ref, shift_ref):
        p = pl.program_id(1)      # 0 = statistics pass, 1 = normalize/store pass
        t = pl.program_id(2)      # spatial tile
        nt = pl.num_programs(2)
        c = cout

        # Transposed conv (k=2, s=2) == per-pixel channel matmul on the MXU.
        # Rows of w are ordered (kh, kw, co); lanes are the spatial tile (lane-dense).
        y = jnp.dot(w_ref[...], x_ref[0],
                    preferred_element_type=jnp.float32)        # (4*Cout, T) f32

        # --- phase 0, first tile: zero the accumulators ---
        @pl.when(jnp.logical_and(p == 0, t == 0))
        def _():
            s_ref[...] = jnp.zeros_like(s_ref)
            ss_ref[...] = jnp.zeros_like(ss_ref)

        # --- phase 0: accumulate per-row sums / sums of squares (lane reduction) ---
        @pl.when(p == 0)
        def _():
            s_ref[...] = s_ref[...] + jnp.sum(y, axis=1, keepdims=True)
            ss_ref[...] = ss_ref[...] + jnp.sum(y * y, axis=1, keepdims=True)

        # --- phase 0, last tile: fold the four (kh,kw) groups per channel and turn
        #     the stats into a per-row scale/shift (InstanceNorm, biased variance) ---
        @pl.when(jnp.logical_and(p == 0, t == nt - 1))
        def _():
            s_c = s_ref[0:c] + s_ref[c:2 * c] + s_ref[2 * c:3 * c] + s_ref[3 * c:4 * c]
            ss_c = ss_ref[0:c] + ss_ref[c:2 * c] + ss_ref[2 * c:3 * c] + ss_ref[3 * c:4 * c]
            mean = s_c * inv_nel
            # E[y^2] - E[y]^2 in f32 (same formulation as the reference).
            var = ss_c * inv_nel - mean * mean
            inv = lax.rsqrt(var + EPS)
            sh = -mean * inv
            for g in range(4):                       # unrolled at trace time
                scale_ref[g * c:(g + 1) * c] = inv
                shift_ref[g * c:(g + 1) * c] = sh

        # --- phase 1: normalize + LeakyReLU(0.2), stream the tile out ---
        @pl.when(p == 1)
        def _():
            z = y * scale_ref[...] + shift_ref[...]          # broadcast over lanes
            o_ref[0] = jnp.where(z >= 0, z, NEG_SLOPE * z).astype(o_ref.dtype)

    return kernel


def transpose_conv_block(x_nchw, weight):
    """x_nchw: (N, Cin, H, W); weight: (Cin, Cout, 2, 2) (PyTorch ConvTranspose2d layout).
    Returns (N, Cout, 2H, 2W)."""
    N, Cin, H, W = x_nchw.shape
    Cout = weight.shape[1]
    HW = H * W
    C4 = 4 * Cout
    itemsize = jnp.dtype(x_nchw.dtype).itemsize

    tile = _pick_spatial_tile(HW, Cin * itemsize, C4 * itemsize)
    n_t = HW // tile

    # Free (contiguous) reshape: kernel consumes x in native NCHW layout.
    x_flat = x_nchw.reshape(N, Cin, HW)
    # (Cin, Cout, kh, kw) -> rows ordered (kh, kw, co); tiny one-time rearrange.
    w_mat = jnp.transpose(weight, (2, 3, 1, 0)).reshape(C4, Cin).astype(x_nchw.dtype)

    kernel = _make_kernel(Cout, 4 * HW)

    y = pl.pallas_call(
        kernel,
        out_shape=jax.ShapeDtypeStruct((N, C4, HW), x_nchw.dtype),
        grid_spec=pltpu.PrefetchScalarGridSpec(
            num_scalar_prefetch=0,
            grid=(N, 2, n_t),                      # (image, phase, spatial tile)
            in_specs=[
                pl.BlockSpec((1, Cin, tile), lambda n, p, t: (n, 0, t)),
                # Constant block index: the weight is DMA'd once and stays resident.
                pl.BlockSpec((C4, Cin), lambda n, p, t: (0, 0)),
            ],
            # During the stats phase (p == 0) the output index is pinned to block 0,
            # so nothing is written back until phase 1 produces real data.
            out_specs=pl.BlockSpec((1, C4, tile), lambda n, p, t: (n, 0, t * p)),
            scratch_shapes=[
                pltpu.VMEM((C4, 1), jnp.float32),   # running sum
                pltpu.VMEM((C4, 1), jnp.float32),   # running sum of squares
                pltpu.VMEM((C4, 1), jnp.float32),   # per-row scale
                pltpu.VMEM((C4, 1), jnp.float32),   # per-row shift
            ],
        ),
        compiler_params=pltpu.CompilerParams(
            dimension_semantics=("parallel", "arbitrary", "arbitrary"),
            vmem_limit_bytes=32 * 1024 * 1024,
        ),
    )(x_flat, w_mat)

    # Interleave (kh, kw) sub-pixel positions back into NCHW spatial grid.
    # Single XLA layout pass; it vanishes if the surrounding network is channels-last.
    y = y.reshape(N, 2, 2, Cout, H, W)              # (n, kh, kw, co, h, w)
    y = jnp.transpose(y, (0, 3, 4, 1, 5, 2))        # (n, co, h, kh, w, kw)
    return y.reshape(N, Cout, 2 * H, 2 * W)


def _reference(x_nchw, weight):
    """Pure-JAX reference of the same forward pass."""
    N, Cin, H, W = x_nchw.shape
    Cout = weight.shape[1]
    # out[n, co, 2h+kh, 2w+kw] = sum_ci x[n, ci, h, w] * W[ci, co, kh, kw]
    y = jnp.einsum("nchw,cokl->nohwkl", x_nchw, weight)
    y = jnp.transpose(y, (0, 1, 2, 4, 3, 5)).reshape(N, Cout, 2 * H, 2 * W)
    mean = jnp.mean(y, axis=(2, 3), keepdims=True)
    var = jnp.mean((y - mean) ** 2, axis=(2, 3), keepdims=True)
    z = (y - mean) * lax.rsqrt(var + EPS)
    return jnp.where(z >= 0, z, NEG_SLOPE * z)


if __name__ == "__main__":
    key = jax.random.PRNGKey(0)
    k_x, k_w = jax.random.split(key)

    N, Cin, Cout, H, W = 2, 4, 8, 16, 16
    x = jax.random.normal(k_x, (N, Cin, H, W), dtype=jnp.float32)
    # deterministic synthetic init (ConvTranspose2d weight shape: (in, out, 2, 2))
    bound = 1.0 / np.sqrt(Cin * 2 * 2)
    weight = jax.random.uniform(k_w, (Cin, Cout, 2, 2), dtype=jnp.float32,
                                minval=-bound, maxval=bound)

    out = transpose_conv_block(x, weight)
    out = jax.block_until_ready(out)

    ref = _reference(x, weight)
    assert out.shape == (N, Cout, 2 * H, 2 * W)
    np.testing.assert_allclose(np.asarray(out), np.asarray(ref), atol=1e-4, rtol=1e-4)

    print("KERNEL_OK")
</pallas_src>

<mosaic_0001>
module attributes {stable_mosaic.version = 11 : i64} {
  func.func @kernel(%arg0: i32, %arg1: i32, %arg2: i32, %arg3: memref<1x4x256xf32, #tpu.memory_space<vmem>>, %arg4: memref<32x4xf32, #tpu.memory_space<vmem>>, %arg5: memref<1x32x256xf32, #tpu.memory_space<vmem>>, %arg6: memref<32x1xf32, #tpu.memory_space<vmem>>, %arg7: memref<32x1xf32, #tpu.memory_space<vmem>>, %arg8: memref<32x1xf32, #tpu.memory_space<vmem>>, %arg9: memref<32x1xf32, #tpu.memory_space<vmem>>) attributes {dimension_semantics = [#tpu.dimension_semantics<parallel>, #tpu.dimension_semantics<arbitrary>, #tpu.dimension_semantics<arbitrary>], iteration_bounds = array<i64: 2, 2, 1>, scalar_prefetch = 0 : i64, scratch_operands = 4 : i64, tpu.core_type = #tpu.core_type<tc>, window_params = [{transform_indices = @transform_0, window_bounds = array<i64: 1, 4, 256>}, {pipeline_mode = #tpu.pipeline_mode<synchronous>, transform_indices = @transform_1, window_bounds = array<i64: 32, 4>}, {transform_indices = @transform_2, window_bounds = array<i64: 1, 32, 256>}]} {
    %c0 = arith.constant 0 : index
    %c0_0 = arith.constant 0 : index
    %0 = vector.load %arg4[%c0, %c0_0] : memref<32x4xf32, #tpu.memory_space<vmem>>, vector<32x4xf32>
    %c0_1 = arith.constant 0 : index
    %c0_2 = arith.constant 0 : index
    %c0_3 = arith.constant 0 : index
    %1 = vector.load %arg3[%c0_1, %c0_2, %c0_3] : memref<1x4x256xf32, #tpu.memory_space<vmem>>, vector<1x4x256xf32>
    %2 = vector.shape_cast %1 : vector<1x4x256xf32> to vector<4x256xf32>
    %cst = arith.constant dense<0.000000e+00> : vector<32x256xf32>
    %3 = tpu.matmul %0, %2, %cst {dimension_numbers = #tpu.dot_dimension_numbers<[1], [0], [0], [1], [0, 0, 1, 1], [], []>} : vector<32x4xf32>, vector<4x256xf32>, vector<32x256xf32> -> vector<32x256xf32>
    %c0_i32 = arith.constant 0 : i32
    %4 = arith.cmpi eq, %arg1, %c0_i32 : i32
    %c0_i32_4 = arith.constant 0 : i32
    %5 = arith.cmpi eq, %arg2, %c0_i32_4 : i32
    %6 = arith.andi %4, %5 : i1
    %7 = arith.extui %6 : i1 to i32
    %c0_i32_5 = arith.constant 0 : i32
    %8 = arith.cmpi ne, %7, %c0_i32_5 : i32
    scf.if %8 {
      %cst_12 = arith.constant 0.000000e+00 : f32
      %20 = vector.broadcast %cst_12 : f32 to vector<32x1xf32>
      %c0_13 = arith.constant 0 : index
      %c0_14 = arith.constant 0 : index
      %21 = vector.load %arg6[%c0_13, %c0_14] : memref<32x1xf32, #tpu.memory_space<vmem>>, vector<32x1xf32>
      tpu.vector_store %arg6[%c0_13, %c0_14], %20 {strides = array<i32>} : memref<32x1xf32, #tpu.memory_space<vmem>>, vector<32x1xf32>,
      %cst_15 = arith.constant 0.000000e+00 : f32
      %22 = vector.broadcast %cst_15 : f32 to vector<32x1xf32>
      %c0_16 = arith.constant 0 : index
      %c0_17 = arith.constant 0 : index
      %23 = vector.load %arg7[%c0_16, %c0_17] : memref<32x1xf32, #tpu.memory_space<vmem>>, vector<32x1xf32>
      tpu.vector_store %arg7[%c0_16, %c0_17], %22 {strides = array<i32>} : memref<32x1xf32, #tpu.memory_space<vmem>>, vector<32x1xf32>,
    } else {
    }
    %c0_i32_6 = arith.constant 0 : i32
    %9 = arith.cmpi eq, %arg1, %c0_i32_6 : i32
    %10 = arith.extui %9 : i1 to i32
    %c0_i32_7 = arith.constant 0 : i32
    %11 = arith.cmpi ne, %10, %c0_i32_7 : i32
    scf.if %11 {
      %c0_12 = arith.constant 0 : index
      %c0_13 = arith.constant 0 : index
      %20 = vector.load %arg6[%c0_12, %c0_13] : memref<32x1xf32, #tpu.memory_space<vmem>>, vector<32x1xf32>
      %cst_14 = arith.constant dense<0.000000e+00> : vector<32xf32>
      %21 = vector.multi_reduction <add>, %3, %cst_14 [1] : vector<32x256xf32> to vector<32xf32>
      %22 = vector.shape_cast %21 : vector<32xf32> to vector<32x1xf32>
      %23 = arith.addf %20, %22 : vector<32x1xf32>
      %c0_15 = arith.constant 0 : index
      %c0_16 = arith.constant 0 : index
      %24 = vector.load %arg6[%c0_15, %c0_16] : memref<32x1xf32, #tpu.memory_space<vmem>>, vector<32x1xf32>
      tpu.vector_store %arg6[%c0_15, %c0_16], %23 {strides = array<i32>} : memref<32x1xf32, #tpu.memory_space<vmem>>, vector<32x1xf32>,
      %c0_17 = arith.constant 0 : index
      %c0_18 = arith.constant 0 : index
      %25 = vector.load %arg7[%c0_17, %c0_18] : memref<32x1xf32, #tpu.memory_space<vmem>>, vector<32x1xf32>
      %26 = arith.mulf %3, %3 : vector<32x256xf32>
      %cst_19 = arith.constant dense<0.000000e+00> : vector<32xf32>
      %27 = vector.multi_reduction <add>, %26, %cst_19 [1] : vector<32x256xf32> to vector<32xf32>
      %28 = vector.shape_cast %27 : vector<32xf32> to vector<32x1xf32>
      %29 = arith.addf %25, %28 : vector<32x1xf32>
      %c0_20 = arith.constant 0 : index
      %c0_21 = arith.constant 0 : index
      %30 = vector.load %arg7[%c0_20, %c0_21] : memref<32x1xf32, #tpu.memory_space<vmem>>, vector<32x1xf32>
      tpu.vector_store %arg7[%c0_20, %c0_21], %29 {strides = array<i32>} : memref<32x1xf32, #tpu.memory_space<vmem>>, vector<32x1xf32>,
    } else {
    }
    %c0_i32_8 = arith.constant 0 : i32
    %12 = arith.cmpi eq, %arg1, %c0_i32_8 : i32
    %c0_i32_9 = arith.constant 0 : i32
    %13 = arith.cmpi eq, %arg2, %c0_i32_9 : i32
    %14 = arith.andi %12, %13 : i1
    %15 = arith.extui %14 : i1 to i32
    %c0_i32_10 = arith.constant 0 : i32
    %16 = arith.cmpi ne, %15, %c0_i32_10 : i32
    scf.if %16 {
      %c0_12 = arith.constant 0 : index
      %c0_13 = arith.constant 0 : index
      %20 = vector.load %arg6[%c0_12, %c0_13] : memref<32x1xf32, #tpu.memory_space<vmem>>, vector<8x1xf32>
      %c8 = arith.constant 8 : index
      %c0_14 = arith.constant 0 : index
      %21 = vector.load %arg6[%c8, %c0_14] : memref<32x1xf32, #tpu.memory_space<vmem>>, vector<8x1xf32>
      %22 = arith.addf %20, %21 : vector<8x1xf32>
      %c16 = arith.constant 16 : index
      %c0_15 = arith.constant 0 : index
      %23 = vector.load %arg6[%c16, %c0_15] : memref<32x1xf32, #tpu.memory_space<vmem>>, vector<8x1xf32>
      %24 = arith.addf %22, %23 : vector<8x1xf32>
      %c24 = arith.constant 24 : index
      %c0_16 = arith.constant 0 : index
      %25 = vector.load %arg6[%c24, %c0_16] : memref<32x1xf32, #tpu.memory_space<vmem>>, vector<8x1xf32>
      %26 = arith.addf %24, %25 : vector<8x1xf32>
      %c0_17 = arith.constant 0 : index
      %c0_18 = arith.constant 0 : index
      %27 = vector.load %arg7[%c0_17, %c0_18] : memref<32x1xf32, #tpu.memory_space<vmem>>, vector<8x1xf32>
      %c8_19 = arith.constant 8 : index
      %c0_20 = arith.constant 0 : index
      %28 = vector.load %arg7[%c8_19, %c0_20] : memref<32x1xf32, #tpu.memory_space<vmem>>, vector<8x1xf32>
      %29 = arith.addf %27, %28 : vector<8x1xf32>
      %c16_21 = arith.constant 16 : index
      %c0_22 = arith.constant 0 : index
      %30 = vector.load %arg7[%c16_21, %c0_22] : memref<32x1xf32, #tpu.memory_space<vmem>>, vector<8x1xf32>
      %31 = arith.addf %29, %30 : vector<8x1xf32>
      %c24_23 = arith.constant 24 : index
      %c0_24 = arith.constant 0 : index
      %32 = vector.load %arg7[%c24_23, %c0_24] : memref<32x1xf32, #tpu.memory_space<vmem>>, vector<8x1xf32>
      %33 = arith.addf %31, %32 : vector<8x1xf32>
      %cst_25 = arith.constant 9.765625E-4 : f32
      %34 = vector.broadcast %cst_25 : f32 to vector<8x1xf32>
      %35 = arith.mulf %26, %34 : vector<8x1xf32>
      %cst_26 = arith.constant 9.765625E-4 : f32
      %36 = vector.broadcast %cst_26 : f32 to vector<8x1xf32>
      %37 = arith.mulf %33, %36 : vector<8x1xf32>
      %38 = arith.mulf %35, %35 : vector<8x1xf32>
      %39 = arith.subf %37, %38 : vector<8x1xf32>
      %cst_27 = arith.constant 9.99999974E-6 : f32
      %40 = vector.broadcast %cst_27 : f32 to vector<8x1xf32>
      %41 = arith.addf %39, %40 : vector<8x1xf32>
      %42 = math.rsqrt %41 : vector<8x1xf32>
      %cst_28 = arith.constant 0.000000e+00 : f32
      %43 = vector.broadcast %cst_28 : f32 to vector<8x1xf32>
      %44 = arith.subf %43, %35 : vector<8x1xf32>
      %45 = arith.mulf %44, %42 : vector<8x1xf32>
      %c0_29 = arith.constant 0 : index
      %c0_30 = arith.constant 0 : index
      %46 = vector.load %arg8[%c0_29, %c0_30] : memref<32x1xf32, #tpu.memory_space<vmem>>, vector<8x1xf32>
      tpu.vector_store %arg8[%c0_29, %c0_30], %42 {strides = array<i32>} : memref<32x1xf32, #tpu.memory_space<vmem>>, vector<8x1xf32>,
      %c0_31 = arith.constant 0 : index
      %c0_32 = arith.constant 0 : index
      %47 = vector.load %arg9[%c0_31, %c0_32] : memref<32x1xf32, #tpu.memory_space<vmem>>, vector<8x1xf32>
      tpu.vector_store %arg9[%c0_31, %c0_32], %45 {strides = array<i32>} : memref<32x1xf32, #tpu.memory_space<vmem>>, vector<8x1xf32>,
      %c8_33 = arith.constant 8 : index
      %c0_34 = arith.constant 0 : index
      %48 = vector.load %arg8[%c8_33, %c0_34] : memref<32x1xf32, #tpu.memory_space<vmem>>, vector<8x1xf32>
      tpu.vector_store %arg8[%c8_33, %c0_34], %42 {strides = array<i32>} : memref<32x1xf32, #tpu.memory_space<vmem>>, vector<8x1xf32>,
      %c8_35 = arith.constant 8 : index
      %c0_36 = arith.constant 0 : index
      %49 = vector.load %arg9[%c8_35, %c0_36] : memref<32x1xf32, #tpu.memory_space<vmem>>, vector<8x1xf32>
      tpu.vector_store %arg9[%c8_35, %c0_36], %45 {strides = array<i32>} : memref<32x1xf32, #tpu.memory_space<vmem>>, vector<8x1xf32>,
      %c16_37 = arith.constant 16 : index
      %c0_38 = arith.constant 0 : index
      %50 = vector.load %arg8[%c16_37, %c0_38] : memref<32x1xf32, #tpu.memory_space<vmem>>, vector<8x1xf32>
      tpu.vector_store %arg8[%c16_37, %c0_38], %42 {strides = array<i32>} : memref<32x1xf32, #tpu.memory_space<vmem>>, vector<8x1xf32>,
      %c16_39 = arith.constant 16 : index
      %c0_40 = arith.constant 0 : index
      %51 = vector.load %arg9[%c16_39, %c0_40] : memref<32x1xf32, #tpu.memory_space<vmem>>, vector<8x1xf32>
      tpu.vector_store %arg9[%c16_39, %c0_40], %45 {strides = array<i32>} : memref<32x1xf32, #tpu.memory_space<vmem>>, vector<8x1xf32>,
      %c24_41 = arith.constant 24 : index
      %c0_42 = arith.constant 0 : index
      %52 = vector.load %arg8[%c24_41, %c0_42] : memref<32x1xf32, #tpu.memory_space<vmem>>, vector<8x1xf32>
      tpu.vector_store %arg8[%c24_41, %c0_42], %42 {strides = array<i32>} : memref<32x1xf32, #tpu.memory_space<vmem>>, vector<8x1xf32>,
      %c24_43 = arith.constant 24 : index
      %c0_44 = arith.constant 0 : index
      %53 = vector.load %arg9[%c24_43, %c0_44] : memref<32x1xf32, #tpu.memory_space<vmem>>, vector<8x1xf32>
      tpu.vector_store %arg9[%c24_43, %c0_44], %45 {strides = array<i32>} : memref<32x1xf32, #tpu.memory_space<vmem>>, vector<8x1xf32>,
    } else {
    }
    %c1_i32 = arith.constant 1 : i32
    %17 = arith.cmpi eq, %arg1, %c1_i32 : i32
    %18 = arith.extui %17 : i1 to i32
    %c0_i32_11 = arith.constant 0 : i32
    %19 = arith.cmpi ne, %18, %c0_i32_11 : i32
    scf.if %19 {
      %c0_12 = arith.constant 0 : index
      %c0_13 = arith.constant 0 : index
      %20 = vector.load %arg8[%c0_12, %c0_13] : memref<32x1xf32, #tpu.memory_space<vmem>>, vector<32x1xf32>
      %21 = vector.broadcast %20 : vector<32x1xf32> to vector<32x256xf32>
      %22 = arith.mulf %3, %21 : vector<32x256xf32>
      %c0_14 = arith.constant 0 : index
      %c0_15 = arith.constant 0 : index
      %23 = vector.load %arg9[%c0_14, %c0_15] : memref<32x1xf32, #tpu.memory_space<vmem>>, vector<32x1xf32>
      %24 = vector.broadcast %23 : vector<32x1xf32> to vector<32x256xf32>
      %25 = arith.addf %22, %24 : vector<32x256xf32>
      %cst_16 = arith.constant 0.000000e+00 : f32
      %26 = vector.broadcast %cst_16 : f32 to vector<32x256xf32>
      %27 = arith.cmpf oge, %25, %26 : vector<32x256xf32>
      %cst_17 = arith.constant 2.000000e-01 : f32
      %28 = vector.broadcast %cst_17 : f32 to vector<32x256xf32>
      %29 = arith.mulf %28, %25 : vector<32x256xf32>
      %30 = arith.select %27, %25, %29 : vector<32x256xi1>, vector<32x256xf32>
      %c0_18 = arith.constant 0 : index
      %c0_19 = arith.constant 0 : index
      %c0_20 = arith.constant 0 : index
      %31 = vector.load %arg5[%c0_18, %c0_19, %c0_20] : memref<1x32x256xf32, #tpu.memory_space<vmem>>, vector<1x32x256xf32>
      %32 = vector.shape_cast %31 : vector<1x32x256xf32> to vector<32x256xf32>
      %33 = vector.shape_cast %30 : vector<32x256xf32> to vector<1x32x256xf32>
      tpu.vector_store %arg5[%c0_18, %c0_19, %c0_20], %33 {strides = array<i32>} : memref<1x32x256xf32, #tpu.memory_space<vmem>>, vector<1x32x256xf32>,
    } else {
    }
    return
  }
  func.func @transform_0(%arg0: i32, %arg1: i32, %arg2: i32) -> (i32, i32, i32) {
    %c0_i32 = arith.constant 0 : i32
    %c0_i32_0 = arith.constant 0 : i32
    return %arg0, %c0_i32, %arg2 : i32, i32, i32
  }
  func.func @transform_1(%arg0: i32, %arg1: i32, %arg2: i32) -> (i32, i32) {
    %c0_i32 = arith.constant 0 : i32
    %c0_i32_0 = arith.constant 0 : i32
    %c0_i32_1 = arith.constant 0 : i32
    return %c0_i32, %c0_i32_0 : i32, i32
  }
  func.func @transform_2(%arg0: i32, %arg1: i32, %arg2: i32) -> (i32, i32, i32) {
    %0 = arith.muli %arg2, %arg1 : i32
    %c0_i32 = arith.constant 0 : i32
    %c0_i32_0 = arith.constant 0 : i32
    return %arg0, %c0_i32, %0 : i32, i32, i32
  }
}

</mosaic_0001>

<llo_original>
// kernel: tpu_custom_call.1
$region0: #{tpu_custom_call.1}
  #allocation0 [shape = 'u32[]', space=smem, size = 0x4, offset = 0x4, fixed_abs, tag = 'smem constant byte address 0x4 - core index']
  #allocation1 [shape = 'u32[144,128]{1,0:T(1,128)}', space=vmem, size = 0x12000, scoped, tag = 'internal scratch']
  #allocation2 [shape = 'f32[32,1]{1,0:T(8,128)}', space=vmem, size = 0x4000, scoped, tag = 'scratch operand']
  #allocation3 [shape = 'f32[32,1]{1,0:T(8,128)}', space=vmem, size = 0x4000, scoped, tag = 'scratch operand']
  #allocation4 [shape = 'f32[32,1]{1,0:T(8,128)}', space=vmem, size = 0x4000, scoped, tag = 'scratch operand']
  #allocation5 [shape = 'f32[32,1]{1,0:T(8,128)}', space=vmem, size = 0x4000, scoped, tag = 'scratch operand']
  %s0 = inlined_call_operand.vmem [shape: f32[2,4,256], index: 0, kind: input, shape index: {}]
  %s1 = inlined_call_operand.vmem [shape: f32[32,4], index: 1, kind: input, shape index: {}]
  %s2 = inlined_call_operand.hbm [shape: f32[2,32,256], index: 2, kind: output, shape index: {}]
  %s3 = sld [smem:[#allocation0]]
  $region57: #{tpu_custom_call.1} parent=0
    _
  %s5 = ssub.s32 1, %s3
  %s6 = scalar_select 0, %s5, %s3
  $region1: #{tpu_custom_call.1} parent=0
    #allocation6 [shape = 'u8[65536]{0}', space=vmem, size = 0x10000, scoped, tag = 'output window, operand 0']
    #allocation7 [shape = 's32[2]{0}', space=sflag, size = 0x8, scoped, tag = 'scoped memory for tpu_custom_call.1']
    %7 = vsyncpa [#allocation7], 0
    %s8 = scalar_lea.sflag [#allocation7], 1
    %9 = vsyncpa %s8, 0
    loop: start=0, step=1, limit=6
    $region2: #{tpu_custom_call.1} parent=1 // loop_pre_header
      _
    $region3: #{tpu_custom_call.1} parent=1 // loop_header
      %s11 = sphi 0, %s15
      %p12 = scmp.ge.s32.totalorder %s11, 6
      %s18 = sphi 0, %s37
      %s19 = sphi 0, %s33
      %s20 = sphi 0, %s29
      %s21 = sphi 0, %s18
      %s22 = sphi 0, %s19
      %s23 = sphi 0, %s20
      %s24 = sphi 0, %s21
      %s25 = sphi 0, %s22
      %s26 = sphi 0, %s23
      %s42 = sphi 0, %s44
      %s45 = sphi 0, %s42
      %s46 = sphi 0, %s45
      %s62 = sphi 0, %s46
      %s66 = sphi 0, %s66
      %s68 = sphi 0, %s66
      %s69 = sphi 0, %s68
      %s83 = sphi 0, %s69
      %s93 = sphi 0, %s95
      %s96 = sphi 0, %s93
      %s97 = sphi 0, %s96
      %s113 = sphi 0, %s97
    $region4: #{tpu_custom_call.1} parent=1 // loop_header_branch
      %14 = sbr.rel (%p12) target = $region8
    $region5: #{tpu_custom_call.1} parent=1 // loop_body
      %s16 = ssub.s32 %s11, 1
      %s17 = ssub.s32 %s11, 2
      %s27 = sadd.s32 1, %s20
      %p28 = scmp.ge.s32.totalorder %s27, 1
      %s29 = scalar_select %p28, 0, %s27
      %s30 = sadd.s32 1, %s19
      %s31 = scalar_select %p28, %s30, %s19
      %p32 = scmp.ge.s32.totalorder %s31, 2
      %s33 = scalar_select %p32, 0, %s31
      %s34 = sadd.s32 1, %s18
      %s35 = scalar_select %p32, %s34, %s18
      %p36 = scmp.ge.s32.totalorder %s35, 2
      %s37 = scalar_select %p36, 0, %s35
      %s38 = ssub.s32 %s18, %s37
      %s39 = ssub.s32 %s20, %s29
      %s40 = sor.u32 %s38, %s39
      %p41 = scmp.eq.s32.totalorder %s40, 0
      %s43 = sadd.s32 %s42, 1
      %s44 = scalar_select %p41, %s42, %s43
      %p47 = pneg %p41
      %p48 = scmp.eq.s32.totalorder %s11, 3
      %p49 = por %p47, %p48
      %p50 = scmp.ne.s32.totalorder %s42, %s45
      %p51 = scmp.eq.s32.totalorder %s11, 0
      %p52 = por %p50, %p51
      %p53 = scmp.ne.s32.totalorder %s42, %s45
      %p54 = scmp.eq.s32.totalorder %s16, 3
      %p55 = por %p53, %p54
      %p56 = scmp.ne.s32.totalorder %s45, %s46
      %p57 = scmp.eq.s32.totalorder %s16, 0
      %p58 = por %p56, %p57
      %p59 = scmp.ne.s32.totalorder %s45, %s46
      %p60 = scmp.eq.s32.totalorder %s17, 3
      %p61 = por %p59, %p60
      %p63 = scmp.ne.s32.totalorder %s46, %s62
      %p64 = scmp.eq.s32.totalorder %s17, 0
      %p65 = por %p63, %p64
      %s67 = sadd.s32 %s66, 1
      %p70 = scmp.eq.s32.totalorder %s11, 3
      %p71 = scmp.ne.s32.totalorder %s66, %s68
      %p72 = scmp.eq.s32.totalorder %s11, 0
      %p73 = por %p71, %p72
      %p74 = scmp.ne.s32.totalorder %s66, %s68
      %p75 = scmp.eq.s32.totalorder %s16, 3
      %p76 = por %p74, %p75
      %p77 = scmp.ne.s32.totalorder %s68, %s69
      %p78 = scmp.eq.s32.totalorder %s16, 0
      %p79 = por %p77, %p78
      %p80 = scmp.ne.s32.totalorder %s68, %s69
      %p81 = scmp.eq.s32.totalorder %s17, 3
      %p82 = por %p80, %p81
      %p84 = scmp.ne.s32.totalorder %s69, %s83
      %p85 = scmp.eq.s32.totalorder %s17, 0
      %p86 = por %p84, %p85
      %s87 = smul.u32 %s20, %s19
      %s88 = smul.u32 %s29, %s33
      %s89 = ssub.s32 %s18, %s37
      %s90 = ssub.s32 %s87, %s88
      %s91 = sor.u32 %s89, %s90
      %p92 = scmp.eq.s32.totalorder %s91, 0
      %s94 = sadd.s32 %s93, 1
      %s95 = scalar_select %p92, %s93, %s94
      %p98 = pneg %p92
      %p99 = scmp.eq.s32.totalorder %s11, 3
      %p100 = por %p98, %p99
      %p101 = scmp.ne.s32.totalorder %s93, %s96
      %p102 = scmp.eq.s32.totalorder %s11, 0
      %p103 = por %p101, %p102
      %p104 = scmp.ne.s32.totalorder %s93, %s96
      %p105 = scmp.eq.s32.totalorder %s16, 3
      %p106 = por %p104, %p105
      %p107 = scmp.ne.s32.totalorder %s96, %s97
      %p108 = scmp.eq.s32.totalorder %s16, 0
      %p109 = por %p107, %p108
      %p110 = scmp.ne.s32.totalorder %s96, %s97
      %p111 = scmp.eq.s32.totalorder %s17, 3
      %p112 = por %p110, %p111
      %p114 = scmp.ne.s32.totalorder %s97, %s113
      %p115 = scmp.eq.s32.totalorder %s17, 0
      %p116 = por %p114, %p115
      %p117 = scmp.le.s32.totalorder 1, %s11
      %p118 = scmp.lt.s32.totalorder %s11, 5
      %p119 = pnand %p117, %p118
      %p120 = pneg %p119
      // Predicated region
      $region9: #{tpu_custom_call.1} parent=5 // pred_check
        _
      $region10: #{tpu_custom_call.1} parent=5 // pred_check_branch
        %122 = sbr.rel (%p119) target = $region12
      $region11: #{tpu_custom_call.1} parent=5 // pred_region
        %s123 = ssub.s32 %s11, 1
        // Predicated region
        $region13: #{tpu_custom_call.1} parent=11 // pred_check
          %p124 = pneg %p79
        $region14: #{tpu_custom_call.1} parent=11 // pred_check_branch
          %126 = sbr.rel (%p124) target = $region16
        $region15: #{tpu_custom_call.1} parent=11 // pred_region
          _
        $region16: #{tpu_custom_call.1} parent=11 // pred_fallthru
          _
      $region12: #{tpu_custom_call.1} parent=5 // pred_fallthru
        _
      %p127 = scmp.lt.s32.totalorder %s11, 4
      // Predicated region
      $region17: #{tpu_custom_call.1} parent=5 // pred_check
        %p128 = pneg %p127
      $region18: #{tpu_custom_call.1} parent=5 // pred_check_branch
        %130 = sbr.rel (%p128) target = $region20
      $region19: #{tpu_custom_call.1} parent=5 // pred_region
        // Predicated region
        $region21: #{tpu_custom_call.1} parent=19 // pred_check
          %p131 = pneg %p52
        $region22: #{tpu_custom_call.1} parent=19 // pred_check_branch
          %133 = sbr.rel (%p131) target = $region24
        $region23: #{tpu_custom_call.1} parent=19 // pred_region
          %s134 = smul.u32 2, %s20
          %p135 = scmp.lt.s32.totalorder %s18, 1
          %s136 = scalar_select %p135, %s18, 1
          %p137 = scmp.lt.s32.totalorder %s134, 1
          %s138 = scalar_select %p137, %s134, 1
          %s139 = smul.addr %s136, 2
          %s140 = sadd.s32 %s138, %s139
          %s141 = smul.addr %s140, 4
          %s142 = scalar_lea.vmem %s0, %s141
          %s143 = smul.u32 2, %s20
        $region24: #{tpu_custom_call.1} parent=19 // pred_fallthru
          _
      $region20: #{tpu_custom_call.1} parent=5 // pred_fallthru
        _
      %p144 = scmp.le.s32.totalorder 1, %s11
      %p145 = scmp.lt.s32.totalorder %s11, 5
      %p146 = pnand %p144, %p145
      %p147 = pneg %p146
      // Predicated region
      $region25: #{tpu_custom_call.1} parent=5 // pred_check
        _
      $region26: #{tpu_custom_call.1} parent=5 // pred_check_branch
        %149 = sbr.rel (%p146) target = $region28
      $region27: #{tpu_custom_call.1} parent=5 // pred_region
        %s150 = ssub.s32 %s11, 1
        %s151 = smul.u32 2, %s23
        %p152 = scmp.lt.s32.totalorder %s21, 1
        %s153 = scalar_select %p152, %s21, 1
        %p154 = scmp.lt.s32.totalorder %s151, 1
        %s155 = scalar_select %p154, %s151, 1
        %s156 = smul.addr %s153, 2
        %s157 = sadd.s32 %s155, %s156
        %s158 = smul.addr %s157, 4
        %s159 = scalar_lea.vmem %s0, %s158
        %p160 = pneg %p58
        %p161 = pneg %p55
        %p162 = pneg %p79
        %p163 = pneg %p76
        %p164 = pneg %p109
        %p165 = pneg %p106
        %s166 = sand.u32 %s96, 1
        %s167 = scalar_lea.sflag [#allocation7], %s166
        %s168 = sand.u32 %s96, 1
        %s169 = smul.addr %s168, 64
        %s170 = scalar_lea.vmem [#allocation6], %s169
        %s171 = smul.u32 2, %s23
        %p172 = scmp.lt.s32.totalorder %s21, 1
        %s173 = scalar_select %p172, %s21, 1
        %p174 = scmp.lt.s32.totalorder %s171, 1
        %s175 = scalar_select %p174, %s171, 1
        %s176 = smul.addr %s173, 2
        %s177 = sadd.s32 %s175, %s176
        %s178 = smul.addr %s177, 4
        %s179 = scalar_lea.vmem %s0, %s178
        %s180 = smul.u32 2, %s23
        %s181 = smul.u32 %s23, %s22
        %s182 = smul.u32 2, %s181
        %v183 = vld [vmem:[%s1] sm:$0xff]
        %v184 = vld [vmem:[%s1 + $0x8] sm:$0xff]
        %v185 = vld [vmem:[%s1 + $0x10] sm:$0xff]
        %v186 = vld [vmem:[%s1 + $0x18] sm:$0xff]
        %v187 = vld [vmem:[%s179] sm:$0xff]
        %v189 = vcombine.high %v187, %v187
        %vm190 = vcmask 31744
        %v192 = vsel %vm190, %v183, 0
        %v195 = vsel %vm190, %v184, 0
        %v198 = vsel %vm190, %v185, 0
        %v201 = vsel %vm190, %v186, 0
        %vm203 = vcmask 1043456
        %v204 = vsel %vm203, %v187, 0
        %v206 = vsel %vm203, %v189, 0
        %208 = vmatprep.subr.mxu0 %v206
        %209 = vmatpush1.msra.mxu0 %v204
        %210 = vmatprep.subr.mxu0 0.0
        %211 = vmatpush1.msra.mxu0 0.0
        %212 = vmatprep.subr.mxu0 0.0
        %213 = vmatpush1.msra.mxu0 0.0
        %214 = vmatprep.subr.mxu0 0.0
        %215 = vmatpush1.msra.mxu0 0.0
        %216 = vmatprep.subr.mxu0 0.0
        %217 = vmatpush1.msra.mxu0 0.0
        %218 = vmatprep.subr.mxu0 0.0
        %219 = vmatpush1.msra.mxu0 0.0
        %220 = vmatprep.subr.mxu0 0.0
        %221 = vmatpush1.msra.mxu0 0.0
        %222 = vmatprep.subr.mxu0 0.0
        %223 = vmatpush1.msra.mxu0 0.0
        %224 = vmatprep.subr.mxu0 0.0
        %225 = vmatpush1.msra.mxu0 0.0
        %226 = vmatprep.subr.mxu0 0.0
        %227 = vmatpush1.msra.mxu0 0.0
        %228 = vmatprep.subr.mxu0 0.0
        %229 = vmatpush1.msra.mxu0 0.0
        %230 = vmatprep.subr.mxu0 0.0
        %231 = vmatpush1.msra.mxu0 0.0
        %232 = vmatprep.subr.mxu0 0.0
        %233 = vmatpush1.msra.mxu0 0.0
        %234 = vmatprep.subr.mxu0 0.0
        %235 = vmatpush1.msra.mxu0 0.0
        %236 = vmatprep.subr.mxu0 0.0
        %237 = vmatpush1.msra.mxu0 0.0
        %238 = vmatprep.subr.mxu0 0.0
        %239 = vmatpush1.msra.mxu0 0.0
        %240 = vmatprep.subr.mxu0 0.0
        %241 = vmatpush1.msra.mxu0 0.0
        %242 = vmatprep.subr.mxu0 0.0
        %243 = vmatpush1.msra.mxu0 0.0
        %244 = vmatprep.subr.mxu0 0.0
        %245 = vmatpush1.msra.mxu0 0.0
        %246 = vmatprep.subr.mxu0 0.0
        %247 = vmatpush1.msra.mxu0 0.0
        %248 = vmatprep.subr.mxu0 0.0
        %249 = vmatpush1.msra.mxu0 0.0
        %250 = vmatprep.subr.mxu0 0.0
        %251 = vmatpush1.msra.mxu0 0.0
        %252 = vmatprep.subr.mxu0 0.0
        %253 = vmatpush1.msra.mxu0 0.0
        %254 = vmatprep.subr.mxu0 0.0
        %255 = vmatpush1.msra.mxu0 0.0
        %256 = vmatprep.subr.mxu0 0.0
        %257 = vmatpush1.msra.mxu0 0.0
        %258 = vmatprep.subr.mxu0 0.0
        %259 = vmatpush1.msra.mxu0 0.0
        %260 = vmatprep.subr.mxu0 0.0
        %261 = vmatpush1.msra.mxu0 0.0
        %262 = vmatprep.subr.mxu0 0.0
        %263 = vmatpush1.msra.mxu0 0.0
        %264 = vmatprep.subr.mxu0 0.0
        %265 = vmatpush1.msra.mxu0 0.0
        %266 = vmatprep.subr.mxu0 0.0
        %267 = vmatpush1.msra.mxu0 0.0
        %268 = vmatprep.subr.mxu0 0.0
        %269 = vmatpush1.msra.mxu0 0.0
        %270 = vmatprep.subr.mxu0 0.0
        %271 = vmatpush1.msra.mxu0 0.0
        %272 = vmatprep.mubr.f32.mxu0 0.0
        %273 = vmatmul.mubr.f32.gmra.mrb[0].mxu0 %v192
        %v274 = vpop.f32.mrb[0].mxu0
        %v275 = vadd.f32 0.0, %v274
        %v276 = vpop.f32.mrb[0].mxu0
        %v277 = vadd.f32 0.0, %v276
        %278 = vmatprep.mubr.f32.mxu0 0.0
        %279 = vmatmul.mubr.f32.gmra.mrb[0].mxu0 %v195
        %v280 = vpop.f32.mrb[0].mxu0
        %v281 = vadd.f32 0.0, %v280
        %v282 = vpop.f32.mrb[0].mxu0
        %v283 = vadd.f32 0.0, %v282
        %284 = vmatprep.mubr.f32.mxu0 0.0
        %285 = vmatmul.mubr.f32.gmra.mrb[0].mxu0 %v198
        %v286 = vpop.f32.mrb[0].mxu0
        %v287 = vadd.f32 0.0, %v286
        %v288 = vpop.f32.mrb[0].mxu0
        %v289 = vadd.f32 0.0, %v288
        %290 = vmatprep.mubr.f32.mxu0 0.0
        %291 = vmatmul.mubr.f32.gmra.mrb[0].mxu0 %v201
        %v292 = vpop.f32.mrb[0].mxu0
        %v293 = vadd.f32 0.0, %v292
        %v294 = vpop.f32.mrb[0].mxu0
        %v295 = vadd.f32 0.0, %v294
        %296 = vdwg.mxu0
        %p297 = scmp.eq.s32.totalorder %s22, 0
        %p298 = scmp.eq.s32.totalorder %s23, 0
        %p299 = pnand %p297, %p298
        %p300 = pneg %p299
        // Predicated region
        $region29: #{tpu_custom_call.1} parent=27 // pred_check
          _
        $region30: #{tpu_custom_call.1} parent=27 // pred_check_branch
          %302 = sbr.rel (%p299) target = $region32
        $region31: #{tpu_custom_call.1} parent=27 // pred_region
          %vm303 = vcmask 7168
          %304 = vst.msk [vmem:[#allocation2] sm:$0xff] %vm303, 0.0
          %305 = vst.msk [vmem:[#allocation2 + $0x8] sm:$0xff] %vm303, 0.0
          %306 = vst.msk [vmem:[#allocation2 + $0x10] sm:$0xff] %vm303, 0.0
          %307 = vst.msk [vmem:[#allocation2 + $0x18] sm:$0xff] %vm303, 0.0
          %308 = vst.msk [vmem:[#allocation3] sm:$0xff] %vm303, 0.0
          %309 = vst.msk [vmem:[#allocation3 + $0x8] sm:$0xff] %vm303, 0.0
          %310 = vst.msk [vmem:[#allocation3 + $0x10] sm:$0xff] %vm303, 0.0
          %311 = vst.msk [vmem:[#allocation3 + $0x18] sm:$0xff] %vm303, 0.0
        $region32: #{tpu_custom_call.1} parent=27 // pred_fallthru
          _
        // Predicated region
        $region33: #{tpu_custom_call.1} parent=27 // pred_check
          %p312 = pneg %p297
        $region34: #{tpu_custom_call.1} parent=27 // pred_check_branch
          %314 = sbr.rel (%p312) target = $region36
        $region35: #{tpu_custom_call.1} parent=27 // pred_region
          %v315 = vld [vmem:[#allocation2] sm:$0xff]
          %v316 = vld [vmem:[#allocation2 + $0x8] sm:$0xff]
          %v317 = vld [vmem:[#allocation2 + $0x10] sm:$0xff]
          %v318 = vld [vmem:[#allocation2 + $0x18] sm:$0xff]
          %v319 = vadd.f32 %v275, %v277
          %320 = vadd.xlane.f32.xlu0 %v319
          %v321 = vpop.xlane.xlu0 %320
          %v322 = vadd.f32 %v281, %v283
          %323 = vadd.xlane.f32.xlu0 %v322
          %v324 = vpop.xlane.xlu0 %323
          %v325 = vadd.f32 %v287, %v289
          %326 = vadd.xlane.f32.xlu0 %v325
          %v327 = vpop.xlane.xlu0 %326
          %v328 = vadd.f32 %v293, %v295
          %329 = vadd.xlane.f32.xlu0 %v328
          %v330 = vpop.xlane.xlu0 %329
          %v331 = vadd.f32 %v315, %v321
          %v332 = vadd.f32 %v316, %v324
          %v333 = vadd.f32 %v317, %v327
          %v334 = vadd.f32 %v318, %v330
          %vm335 = vcmask 7168
          %336 = vst.msk [vmem:[#allocation2] sm:$0xff] %vm335, %v331
          %337 = vst.msk [vmem:[#allocation2 + $0x8] sm:$0xff] %vm335, %v332
          %338 = vst.msk [vmem:[#allocation2 + $0x10] sm:$0xff] %vm335, %v333
          %339 = vst.msk [vmem:[#allocation2 + $0x18] sm:$0xff] %vm335, %v334
          %v340 = vld [vmem:[#allocation3] sm:$0xff]
          %v341 = vld [vmem:[#allocation3 + $0x8] sm:$0xff]
          %v342 = vld [vmem:[#allocation3 + $0x10] sm:$0xff]
          %v343 = vld [vmem:[#allocation3 + $0x18] sm:$0xff]
          %v344 = vmul.f32 %v275, %v275
          %v345 = vmul.f32 %v277, %v277
          %v346 = vmul.f32 %v281, %v281
          %v347 = vmul.f32 %v283, %v283
          %v348 = vmul.f32 %v287, %v287
          %v349 = vmul.f32 %v289, %v289
          %v350 = vmul.f32 %v293, %v293
          %v351 = vmul.f32 %v295, %v295
          %v352 = vadd.f32 %v344, %v345
          %353 = vadd.xlane.f32.xlu0 %v352
          %v354 = vpop.xlane.xlu0 %353
          %v355 = vadd.f32 %v346, %v347
          %356 = vadd.xlane.f32.xlu0 %v355
          %v357 = vpop.xlane.xlu0 %356
          %v358 = vadd.f32 %v348, %v349
          %359 = vadd.xlane.f32.xlu0 %v358
          %v360 = vpop.xlane.xlu0 %359
          %v361 = vadd.f32 %v350, %v351
          %362 = vadd.xlane.f32.xlu0 %v361
          %v363 = vpop.xlane.xlu0 %362
          %v364 = vadd.f32 %v340, %v354
          %v365 = vadd.f32 %v341, %v357
          %v366 = vadd.f32 %v342, %v360
          %v367 = vadd.f32 %v343, %v363
          %368 = vst.msk [vmem:[#allocation3] sm:$0xff] %vm335, %v364
          %369 = vst.msk [vmem:[#allocation3 + $0x8] sm:$0xff] %vm335, %v365
          %370 = vst.msk [vmem:[#allocation3 + $0x10] sm:$0xff] %vm335, %v366
          %371 = vst.msk [vmem:[#allocation3 + $0x18] sm:$0xff] %vm335, %v367
        $region36: #{tpu_custom_call.1} parent=27 // pred_fallthru
          _
        // Predicated region
        $region37: #{tpu_custom_call.1} parent=27 // pred_check
          _
        $region38: #{tpu_custom_call.1} parent=27 // pred_check_branch
          %373 = sbr.rel (%p299) target = $region40
        $region39: #{tpu_custom_call.1} parent=27 // pred_region
          %v374 = vld [vmem:[#allocation2] sm:$0xff]
          %v375 = vld [vmem:[#allocation2 + $0x8] sm:$0xff]
          %v376 = vadd.f32 %v374, %v375
          %v377 = vld [vmem:[#allocation2 + $0x10] sm:$0xff]
          %v378 = vadd.f32 %v376, %v377
          %v379 = vld [vmem:[#allocation2 + $0x18] sm:$0xff]
          %v380 = vadd.f32 %v378, %v379
          %v381 = vld [vmem:[#allocation3] sm:$0xff]
          %v382 = vld [vmem:[#allocation3 + $0x8] sm:$0xff]
          %v383 = vadd.f32 %v381, %v382
          %v384 = vld [vmem:[#allocation3 + $0x10] sm:$0xff]
          %v385 = vadd.f32 %v383, %v384
          %v386 = vld [vmem:[#allocation3 + $0x18] sm:$0xff]
          %v387 = vadd.f32 %v385, %v386
          %v388 = vmul.f32 %v380, 0.0009765625
          %v389 = vmul.f32 %v387, 0.0009765625
          %v390 = vmul.f32 %v388, %v388
          %v391 = vsub.f32 %v389, %v390
          %v392 = vadd.f32 %v391, 1e-05
          %v393 = vrsqrt.pop %v392
          %v394 = vsub.f32 0.0, %v388
          %v395 = vmul.f32 %v394, %v393
          %vm396 = vcmask 7168
          %397 = vst.msk [vmem:[#allocation4] sm:$0xff] %vm396, %v393
          %398 = vst.msk [vmem:[#allocation5] sm:$0xff] %vm396, %v395
          %399 = vst.msk [vmem:[#allocation4 + $0x8] sm:$0xff] %vm396, %v393
          %400 = vst.msk [vmem:[#allocation5 + $0x8] sm:$0xff] %vm396, %v395
          %401 = vst.msk [vmem:[#allocation4 + $0x10] sm:$0xff] %vm396, %v393
          %402 = vst.msk [vmem:[#allocation5 + $0x10] sm:$0xff] %vm396, %v395
          %403 = vst.msk [vmem:[#allocation4 + $0x18] sm:$0xff] %vm396, %v393
          %404 = vst.msk [vmem:[#allocation5 + $0x18] sm:$0xff] %vm396, %v395
        $region40: #{tpu_custom_call.1} parent=27 // pred_fallthru
          _
        %p405 = scmp.eq.s32.totalorder %s22, 1
        // Predicated region
        $region41: #{tpu_custom_call.1} parent=27 // pred_check
          %p406 = pneg %p405
        $region42: #{tpu_custom_call.1} parent=27 // pred_check_branch
          %408 = sbr.rel (%p406) target = $region44
        $region43: #{tpu_custom_call.1} parent=27 // pred_region
          %v409 = vld [vmem:[#allocation4] sm:$0xff]
          %v410 = vld [vmem:[#allocation4 + $0x8] sm:$0xff]
          %v411 = vld [vmem:[#allocation4 + $0x10] sm:$0xff]
          %v412 = vld [vmem:[#allocation4 + $0x18] sm:$0xff]
          %414 = vset.pattern.permute.xlu0 0
          %415 = vperm.xlu0 %414, %v409
          %v416 = vpop.permute.xlu0 %415
          %419 = vset.pattern.permute.xlu0 0
          %420 = vperm.xlu0 %419, %v410
          %v421 = vpop.permute.xlu0 %420
          %424 = vset.pattern.permute.xlu0 0
          %425 = vperm.xlu0 %424, %v411
          %v426 = vpop.permute.xlu0 %425
          %429 = vset.pattern.permute.xlu0 0
          %430 = vperm.xlu0 %429, %v412
          %v431 = vpop.permute.xlu0 %430
          %v433 = vmul.f32 %v275, %v416
          %v434 = vmul.f32 %v277, %v416
          %v435 = vmul.f32 %v281, %v421
          %v436 = vmul.f32 %v283, %v421
          %v437 = vmul.f32 %v287, %v426
          %v438 = vmul.f32 %v289, %v426
          %v439 = vmul.f32 %v293, %v431
          %v440 = vmul.f32 %v295, %v431
          %v441 = vld [vmem:[#allocation5] sm:$0xff]
          %v442 = vld [vmem:[#allocation5 + $0x8] sm:$0xff]
          %v443 = vld [vmem:[#allocation5 + $0x10] sm:$0xff]
          %v444 = vld [vmem:[#allocation5 + $0x18] sm:$0xff]
          %446 = vset.pattern.permute.xlu0 0
          %447 = vperm.xlu0 %446, %v441
          %v448 = vpop.permute.xlu0 %447
          %451 = vset.pattern.permute.xlu0 0
          %452 = vperm.xlu0 %451, %v442
          %v453 = vpop.permute.xlu0 %452
          %456 = vset.pattern.permute.xlu0 0
          %457 = vperm.xlu0 %456, %v443
          %v458 = vpop.permute.xlu0 %457
          %461 = vset.pattern.permute.xlu0 0
          %462 = vperm.xlu0 %461, %v444
          %v463 = vpop.permute.xlu0 %462
          %v465 = vadd.f32 %v433, %v448
          %v466 = vadd.f32 %v434, %v448
          %v467 = vadd.f32 %v435, %v453
          %v468 = vadd.f32 %v436, %v453
          %v469 = vadd.f32 %v437, %v458
          %v470 = vadd.f32 %v438, %v458
          %v471 = vadd.f32 %v439, %v463
          %v472 = vadd.f32 %v440, %v463
          %vm473 = vcmp.ge.f32.partialorder %v465, 0.0
          %vm474 = vcmp.ge.f32.partialorder %v466, 0.0
          %vm475 = vcmp.ge.f32.partialorder %v467, 0.0
          %vm476 = vcmp.ge.f32.partialorder %v468, 0.0
          %vm477 = vcmp.ge.f32.partialorder %v469, 0.0
          %vm478 = vcmp.ge.f32.partialorder %v470, 0.0
          %vm479 = vcmp.ge.f32.partialorder %v471, 0.0
          %vm480 = vcmp.ge.f32.partialorder %v472, 0.0
          %v481 = vmul.f32 %v465, 0.2
          %v482 = vmul.f32 %v466, 0.2
          %v483 = vmul.f32 %v467, 0.2
          %v484 = vmul.f32 %v468, 0.2
          %v485 = vmul.f32 %v469, 0.2
          %v486 = vmul.f32 %v470, 0.2
          %v487 = vmul.f32 %v471, 0.2
          %v488 = vmul.f32 %v472, 0.2
          %v489 = vsel %vm473, %v465, %v481
          %v490 = vsel %vm474, %v466, %v482
          %v491 = vsel %vm475, %v467, %v483
          %v492 = vsel %vm476, %v468, %v484
          %v493 = vsel %vm477, %v469, %v485
          %v494 = vsel %vm478, %v470, %v486
          %v495 = vsel %vm479, %v471, %v487
          %v496 = vsel %vm480, %v472, %v488
          %497 = vst [vmem:[%s170] sm:$0xff] %v489
          %498 = vst [vmem:[%s170 + $0x8] sm:$0xff] %v490
          %499 = vst [vmem:[%s170 + $0x10] sm:$0xff] %v491
          %500 = vst [vmem:[%s170 + $0x18] sm:$0xff] %v492
          %501 = vst [vmem:[%s170 + $0x20] sm:$0xff] %v493
          %502 = vst [vmem:[%s170 + $0x28] sm:$0xff] %v494
          %503 = vst [vmem:[%s170 + $0x30] sm:$0xff] %v495
          %504 = vst [vmem:[%s170 + $0x38] sm:$0xff] %v496
        $region44: #{tpu_custom_call.1} parent=27 // pred_fallthru
          _
        %s505 = sand.u32 %s96, 1
        %s506 = scalar_lea.sflag [#allocation7], %s505
        %s507 = sand.u32 %s96, 1
        %s508 = smul.addr %s507, 64
        %s509 = scalar_lea.vmem [#allocation6], %s508
        // Predicated region
        $region45: #{tpu_custom_call.1} parent=27 // pred_check
          %p510 = pneg %p106
        $region46: #{tpu_custom_call.1} parent=27 // pred_check_branch
          %512 = sbr.rel (%p510) target = $region48
        $region47: #{tpu_custom_call.1} parent=27 // pred_region
          %s513 = smul.u32 %s23, %s22
          %s514 = smul.u32 2, %s513
          %s516 = ssub.s32 1024, 1024
          %517 = vsyncadd %s506, %s516
          %s518 = smul.addr %s21, 8
          %s519 = sadd.s32 %s514, %s518
          %s520 = smul.addr %s519, 128
          %s521 = scalar_lea.hbm %s2, %s520
          %s522 = sshll.u32 %s509, 4
          %s523 = int_to_ptr.vmem [resolvable:$true] %s522
          %528 = dma.vmem_to_hbm [thread:$0]  %s523, 1024, %s521, %s506, 256, 256, 16
        $region48: #{tpu_custom_call.1} parent=27 // pred_fallthru
          _
      $region28: #{tpu_custom_call.1} parent=5 // pred_fallthru
        _
      %p529 = scmp.le.s32.totalorder 2, %s11
      // Predicated region
      $region49: #{tpu_custom_call.1} parent=5 // pred_check
        %p530 = pneg %p529
      $region50: #{tpu_custom_call.1} parent=5 // pred_check_branch
        %532 = sbr.rel (%p530) target = $region52
      $region51: #{tpu_custom_call.1} parent=5 // pred_region
        %s533 = ssub.s32 %s11, 2
        // Predicated region
        $region53: #{tpu_custom_call.1} parent=51 // pred_check
          %p534 = pneg %p112
        $region54: #{tpu_custom_call.1} parent=51 // pred_check_branch
          %536 = sbr.rel (%p534) target = $region56
        $region55: #{tpu_custom_call.1} parent=51 // pred_region
          %s537 = sand.u32 %s97, 1
          %s538 = scalar_lea.sflag [#allocation7], %s537
          %s539 = sand.u32 %s97, 1
          %s540 = smul.addr %s539, 64
          %s541 = scalar_lea.vmem [#allocation6], %s540
          %542 = dma.done %s538, 1024
        $region56: #{tpu_custom_call.1} parent=51 // pred_fallthru
          _
      $region52: #{tpu_custom_call.1} parent=5 // pred_fallthru
        _
    $region6: #{tpu_custom_call.1} parent=1 // loop_footer
      %s15 = sadd.s32 1, %s11
    $region7: #{tpu_custom_call.1} parent=1 // loop_footer_branch
      %10 = sbr.rel target = $region3
    $region8: #{tpu_custom_call.1} parent=1 // loop_exit
      _
    %543 = vsyncpa [#allocation7], 1
    %s544 = scalar_lea.sflag [#allocation7], 1
    %545 = vsyncpa %s544, 1

</llo_original>
